<compile_context>
chip_gen: v5e
topology: v5e:2x2
jax: 0.10.0
libtpu: 0.0.40
codegen_flags: <defaults>
</compile_context>

<pallas_src>
import functools

import jax
import jax.numpy as jnp
from jax.experimental import pallas as pl
from jax.experimental.pallas import tpu as pltpu

_LANE = 128


def _pad_to(n, m):
    return ((n + m - 1) // m) * m


def _vmem_capacity_bytes():
    """Physical VMEM per TensorCore (128 MiB on v5e/v6e, 64 MiB on v7x)."""
    try:
        return int(pltpu.get_tpu_info().vmem_capacity_bytes)
    except Exception:
        return 128 * 1024 * 1024


# ----------------------------------------------------------------------------
# Fused single-pass kernel: one (Bb, C, S) block per grid step (S un-padded).
# ----------------------------------------------------------------------------
def _fused_se_kernel(x_ref, w1t_ref, b1_ref, w2t_ref, b2_ref, o_ref, *, inv_s):
    # Squeeze: f32 accumulation over the (possibly non-128-multiple) last dim;
    # Mosaic masks the unaligned lane reduction, divide by the TRUE S.
    squeeze = jnp.sum(x_ref[...], axis=-1, dtype=jnp.float32) * inv_s   # (Bb, C)

    # Excitation: batched lane-dense tiny matmuls with pre-transposed weights.
    h = jnp.dot(squeeze, w1t_ref[...],
                preferred_element_type=jnp.float32) + b1_ref[...]       # (Bb, Cr)
    h = jnp.maximum(h, 0.0)
    g = jnp.dot(h, w2t_ref[...],
                preferred_element_type=jnp.float32) + b2_ref[...]       # (Bb, C)
    g = jax.nn.sigmoid(g)

    # Re-index the VMEM-resident ref for the store (keeps vreg pressure flat)
    # and scale in the input's native dtype (no full-tile f32 copy).
    o_ref[...] = x_ref[...] * g.astype(o_ref.dtype)[:, :, None]


# ----------------------------------------------------------------------------
# Two-pass path, phase 1: S-tiled squeeze (cdiv grid, in-kernel tail mask)
# followed by in-kernel gate computation.  grid = (B, S_tiles), S last.
# ----------------------------------------------------------------------------
def _squeeze_gate_kernel(x_ref, w1t_ref, b1_ref, w2t_ref, b2_ref,
                         g_ref, acc_ref, *, inv_s, true_s, tile_s, mask_tail):
    s_idx = pl.program_id(1)

    @pl.when(s_idx == 0)
    def _():
        acc_ref[...] = jnp.zeros_like(acc_ref)

    x = x_ref[...]                                           # (Bb, C, Ts)
    if mask_tail:
        # cdiv grid: the last tile can extend past S; its out-of-range lanes
        # are undefined, so zero them before accumulating.
        lane = jax.lax.broadcasted_iota(jnp.int32, x.shape, dimension=x.ndim - 1)
        x = jnp.where(lane + s_idx * tile_s < true_s, x, jnp.zeros_like(x))
    acc_ref[...] += jnp.sum(x, axis=-1, dtype=jnp.float32)   # (Bb, C)

    @pl.when(s_idx == pl.num_programs(1) - 1)
    def _():
        squeeze = acc_ref[...] * inv_s                       # (Bb, C)
        h = jnp.dot(squeeze, w1t_ref[...],
                    preferred_element_type=jnp.float32) + b1_ref[...]
        h = jnp.maximum(h, 0.0)
        g = jnp.dot(h, w2t_ref[...],
                    preferred_element_type=jnp.float32) + b2_ref[...]
        g_ref[...] = jax.nn.sigmoid(g)[:, :, None]           # (Bb, C, 1)


# ----------------------------------------------------------------------------
# Two-pass path, phase 2: stream S tiles and apply the per-channel gate.
# Tail tile needs no mask: out-of-range output lanes are discarded on writeback.
# ----------------------------------------------------------------------------
def _scale_kernel(x_ref, g_ref, o_ref):
    o_ref[...] = x_ref[...] * g_ref[...].astype(o_ref.dtype)


# ----------------------------------------------------------------------------
# Wrapper
# ----------------------------------------------------------------------------
def _pick_fused_batch_block(batch, per_row_bytes, block_budget, min_block_bytes):
    """Fold batch rows into a block, preferring MORE grid steps over maximal
    blocks: stop folding once a block reaches ~min_block_bytes; never drop
    below 2 grid steps (software pipelining + megacore) unless batch == 1."""
    best = 1
    for cand in range(1, batch + 1):
        if batch % cand:
            continue
        if cand * per_row_bytes > block_budget:
            break
        if cand > 1 and batch // cand < 2:
            break
        best = cand
        if cand * per_row_bytes >= min_block_bytes:
            break
    return best


def channel_se_3d(x, w1, b1, w2, b2, *, force_two_pass=False, spatial_tile=None):
    """x: (B, C, D, H, W); w1: (Cr, C); b1: (Cr,); w2: (C, Cr); b2: (C,)."""
    B, C, D, H, W = x.shape
    Cr = w1.shape[0]
    S = D * H * W
    inv_s = 1.0 / float(S)
    itemsize = jnp.dtype(x.dtype).itemsize

    # Pre-transposed weights / 2-D biases for batched lane-dense matmuls.
    w1t = jnp.asarray(w1, jnp.float32).T            # (C, Cr)
    w2t = jnp.asarray(w2, jnp.float32).T            # (Cr, C)
    b1r = jnp.asarray(b1, jnp.float32).reshape(1, Cr)
    b2r = jnp.asarray(b2, jnp.float32).reshape(1, C)

    # Per-generation VMEM budgets (review): 96 MiB limit / 16 MiB block budget
    # on 128 MiB parts (v5e/v6e); 48 MiB / 4 MiB on v7x (64 MiB physical VMEM)
    # so 2x input + 2x output double-buffers plus weights keep headroom.
    vmem_cap = _vmem_capacity_bytes()
    vmem_limit = min(vmem_cap * 3 // 4, 96 * 1024 * 1024)
    block_budget = (16 * 1024 * 1024 if vmem_cap > 64 * 1024 * 1024
                    else 4 * 1024 * 1024)
    cparams = dict(vmem_limit_bytes=vmem_limit)

    # x stays un-padded in HBM; (B, C, D*H*W) reshape is metadata-only.
    x3 = x.reshape(B, C, S)
    per_row_bytes = C * S * itemsize
    use_two_pass = force_two_pass or (per_row_bytes > block_budget)

    if not use_two_pass:
        # ---- fused single pass (x read + written exactly once) -------------
        Bb = _pick_fused_batch_block(B, per_row_bytes, block_budget,
                                     min_block_bytes=1 << 20)
        out3 = pl.pallas_call(
            functools.partial(_fused_se_kernel, inv_s=inv_s),
            out_shape=jax.ShapeDtypeStruct((B, C, S), x.dtype),
            grid_spec=pltpu.PrefetchScalarGridSpec(
                num_scalar_prefetch=0,
                grid=(B // Bb,),
                in_specs=[
                    pl.BlockSpec((Bb, C, S), lambda b: (b, 0, 0)),   # x
                    pl.BlockSpec((C, Cr), lambda b: (0, 0)),         # w1.T
                    pl.BlockSpec((1, Cr), lambda b: (0, 0)),         # b1
                    pl.BlockSpec((Cr, C), lambda b: (0, 0)),         # w2.T
                    pl.BlockSpec((1, C), lambda b: (0, 0)),          # b2
                ],
                out_specs=pl.BlockSpec((Bb, C, S), lambda b: (b, 0, 0)),
            ),
            compiler_params=pltpu.CompilerParams(
                dimension_semantics=("parallel",), **cparams),
        )(x3, w1t, b1r, w2t, b2r)

    else:
        # ---- two-pass, S-tiled (large volumes / forced) ---------------------
        s_pad128 = _pad_to(S, _LANE)
        ts_cap = max(_LANE,
                     (block_budget // max(1, C * itemsize)) // _LANE * _LANE)
        if spatial_tile is not None:
            # Respect caller override but never below 512 lanes (128-lane
            # tiles reach ~29% of HBM roofline) nor above the VMEM budget.
            Ts = max(512, (int(spatial_tile) // _LANE) * _LANE)
            Ts = min(Ts, ts_cap)
        else:
            Ts = min(2048, ts_cap)
        Ts = max(_LANE, min(Ts, s_pad128))
        n_s = pl.cdiv(S, Ts)                    # no S_pad overshoot
        mask_tail = (S % Ts) != 0
        Bb = 1
        # Note: on v7x only the batch axis shards across the 2 TensorCores in
        # phase 1; for B == 1 inference shapes a core-split over S would help.

        # Phase 1: squeeze accumulation over S tiles + gate computation.
        gate = pl.pallas_call(
            functools.partial(_squeeze_gate_kernel, inv_s=inv_s, true_s=S,
                              tile_s=Ts, mask_tail=mask_tail),
            out_shape=jax.ShapeDtypeStruct((B, C, 1), jnp.float32),
            grid_spec=pltpu.PrefetchScalarGridSpec(
                num_scalar_prefetch=0,
                grid=(B // Bb, n_s),
                in_specs=[
                    pl.BlockSpec((Bb, C, Ts), lambda b, s: (b, 0, s)),   # x tile
                    pl.BlockSpec((C, Cr), lambda b, s: (0, 0)),          # w1.T
                    pl.BlockSpec((1, Cr), lambda b, s: (0, 0)),          # b1
                    pl.BlockSpec((Cr, C), lambda b, s: (0, 0)),          # w2.T
                    pl.BlockSpec((1, C), lambda b, s: (0, 0)),           # b2
                ],
                out_specs=pl.BlockSpec((Bb, C, 1), lambda b, s: (b, 0, 0)),
                scratch_shapes=[pltpu.VMEM((Bb, C), jnp.float32)],
            ),
            compiler_params=pltpu.CompilerParams(
                dimension_semantics=("parallel", "arbitrary"), **cparams),
        )(x3, w1t, b1r, w2t, b2r)

        # Phase 2: stream S tiles again and apply the per-channel gate.
        out3 = pl.pallas_call(
            _scale_kernel,
            out_shape=jax.ShapeDtypeStruct((B, C, S), x.dtype),
            grid_spec=pltpu.PrefetchScalarGridSpec(
                num_scalar_prefetch=0,
                grid=(B // Bb, n_s),
                in_specs=[
                    pl.BlockSpec((Bb, C, Ts), lambda b, s: (b, 0, s)),   # x tile
                    pl.BlockSpec((Bb, C, 1), lambda b, s: (b, 0, 0)),    # gate
                ],
                out_specs=pl.BlockSpec((Bb, C, Ts), lambda b, s: (b, 0, s)),
            ),
            compiler_params=pltpu.CompilerParams(
                dimension_semantics=("parallel", "parallel"), **cparams),
        )(x3, gate)

    return out3.reshape(B, C, D, H, W)


# ----------------------------------------------------------------------------
# Pure-JAX reference
# ----------------------------------------------------------------------------
def _reference(x, w1, b1, w2, b2):
    xf = x.astype(jnp.float32)
    sq = jnp.mean(xf, axis=(2, 3, 4))                       # (B, C)
    h = jax.nn.relu(sq @ w1.T + b1)                         # (B, Cr)
    g = jax.nn.sigmoid(h @ w2.T + b2)                       # (B, C)
    return (xf * g[:, :, None, None, None]).astype(x.dtype)


if __name__ == "__main__":
    key = jax.random.PRNGKey(0)

    def make_params(k, C, Cr):
        k1, k2, k3, k4 = jax.random.split(k, 4)
        lim1 = 1.0 / jnp.sqrt(C)
        lim2 = 1.0 / jnp.sqrt(Cr)
        w1 = jax.random.uniform(k1, (Cr, C), jnp.float32, -lim1, lim1)
        b1 = jax.random.uniform(k2, (Cr,), jnp.float32, -lim1, lim1)
        w2 = jax.random.uniform(k3, (C, Cr), jnp.float32, -lim2, lim2)
        b2 = jax.random.uniform(k4, (C,), jnp.float32, -lim2, lim2)
        return w1, b1, w2, b2

    def check(shape, *, two_pass_tile=None, label=""):
        global key
        B, C, D, H, W = shape
        Cr = C // 2
        kx, kp, key = jax.random.split(key, 3)
        x = jax.random.normal(kx, shape, dtype=jnp.float32)
        w1, b1, w2, b2 = make_params(kp, C, Cr)
        ref = _reference(x, w1, b1, w2, b2)

        out = jax.block_until_ready(channel_se_3d(x, w1, b1, w2, b2))
        assert out.shape == x.shape
        assert jnp.allclose(out, ref, atol=1e-5, rtol=1e-5), f"fused {label}"

        out2 = jax.block_until_ready(
            channel_se_3d(x, w1, b1, w2, b2, force_two_pass=True,
                          spatial_tile=two_pass_tile))
        assert jnp.allclose(out2, ref, atol=1e-5, rtol=1e-5), f"two-pass {label}"

    # Case 1: lane-aligned volume (S = 512). C == D so the PyTorch view is valid.
    check((2, 8, 8, 8, 8), label="S=512")

    # Case 2: S = 336 (not a multiple of 128) -> un-padded fused block and a
    # single masked two-pass tile (no host-side pad / slice anywhere).
    check((2, 8, 8, 6, 7), label="S=336")

    # Case 3: S = 960 with a 512-lane tile -> multi-tile accumulation + masked
    # tail tile in the two-pass path.
    check((2, 8, 8, 10, 12), two_pass_tile=512, label="S=960")

    print("KERNEL_OK")
</pallas_src>

<mosaic_0001>
module attributes {stable_mosaic.version = 11 : i64} {
  func.func @_fused_se_kernel(%arg0: i32, %arg1: memref<1x8x512xf32, #tpu.memory_space<vmem>>, %arg2: memref<8x4xf32, #tpu.memory_space<vmem>>, %arg3: memref<1x4xf32, #tpu.memory_space<vmem>>, %arg4: memref<4x8xf32, #tpu.memory_space<vmem>>, %arg5: memref<1x8xf32, #tpu.memory_space<vmem>>, %arg6: memref<1x8x512xf32, #tpu.memory_space<vmem>>) attributes {dimension_semantics = [#tpu.dimension_semantics<parallel>], iteration_bounds = array<i64: 2>, scalar_prefetch = 0 : i64, scratch_operands = 0 : i64, tpu.core_type = #tpu.core_type<tc>, window_params = [{transform_indices = @transform_0, window_bounds = array<i64: 1, 8, 512>}, {pipeline_mode = #tpu.pipeline_mode<synchronous>, transform_indices = @transform_1, window_bounds = array<i64: 8, 4>}, {pipeline_mode = #tpu.pipeline_mode<synchronous>, transform_indices = @transform_2, window_bounds = array<i64: 1, 4>}, {pipeline_mode = #tpu.pipeline_mode<synchronous>, transform_indices = @transform_3, window_bounds = array<i64: 4, 8>}, {pipeline_mode = #tpu.pipeline_mode<synchronous>, transform_indices = @transform_4, window_bounds = array<i64: 1, 8>}, {transform_indices = @transform_5, window_bounds = array<i64: 1, 8, 512>}]} {
    %c0 = arith.constant 0 : index
    %c0_0 = arith.constant 0 : index
    %c0_1 = arith.constant 0 : index
    %0 = vector.load %arg1[%c0, %c0_0, %c0_1] : memref<1x8x512xf32, #tpu.memory_space<vmem>>, vector<1x8x512xf32>
    %cst = arith.constant dense<0.000000e+00> : vector<1x8xf32>
    %1 = vector.multi_reduction <add>, %0, %cst [2] : vector<1x8x512xf32> to vector<1x8xf32>
    %cst_2 = arith.constant 0.001953125 : f32
    %2 = vector.broadcast %cst_2 : f32 to vector<1x8xf32>
    %3 = arith.mulf %1, %2 : vector<1x8xf32>
    %c0_3 = arith.constant 0 : index
    %c0_4 = arith.constant 0 : index
    %4 = vector.load %arg2[%c0_3, %c0_4] : memref<8x4xf32, #tpu.memory_space<vmem>>, vector<8x4xf32>
    %cst_5 = arith.constant dense<0.000000e+00> : vector<1x4xf32>
    %5 = tpu.matmul %3, %4, %cst_5 {dimension_numbers = #tpu.dot_dimension_numbers<[1], [0], [0], [1], [0, 0, 1, 1], [], []>} : vector<1x8xf32>, vector<8x4xf32>, vector<1x4xf32> -> vector<1x4xf32>
    %c0_6 = arith.constant 0 : index
    %c0_7 = arith.constant 0 : index
    %6 = vector.load %arg3[%c0_6, %c0_7] : memref<1x4xf32, #tpu.memory_space<vmem>>, vector<1x4xf32>
    %7 = arith.addf %5, %6 : vector<1x4xf32>
    %cst_8 = arith.constant 0.000000e+00 : f32
    %8 = vector.broadcast %cst_8 : f32 to vector<1x4xf32>
    %9 = arith.maximumf %7, %8 : vector<1x4xf32>
    %c0_9 = arith.constant 0 : index
    %c0_10 = arith.constant 0 : index
    %10 = vector.load %arg4[%c0_9, %c0_10] : memref<4x8xf32, #tpu.memory_space<vmem>>, vector<4x8xf32>
    %cst_11 = arith.constant dense<0.000000e+00> : vector<1x8xf32>
    %11 = tpu.matmul %9, %10, %cst_11 {dimension_numbers = #tpu.dot_dimension_numbers<[1], [0], [0], [1], [0, 0, 1, 1], [], []>} : vector<1x4xf32>, vector<4x8xf32>, vector<1x8xf32> -> vector<1x8xf32>
    %c0_12 = arith.constant 0 : index
    %c0_13 = arith.constant 0 : index
    %12 = vector.load %arg5[%c0_12, %c0_13] : memref<1x8xf32, #tpu.memory_space<vmem>>, vector<1x8xf32>
    %13 = arith.addf %11, %12 : vector<1x8xf32>
    %14 = arith.negf %13 : vector<1x8xf32>
    %15 = math.exp %14 : vector<1x8xf32>
    %cst_14 = arith.constant 1.000000e+00 : f32
    %16 = vector.broadcast %cst_14 : f32 to vector<1x8xf32>
    %17 = arith.addf %16, %15 : vector<1x8xf32>
    %18 = arith.divf %16, %17 : vector<1x8xf32>
    %c0_15 = arith.constant 0 : index
    %c0_16 = arith.constant 0 : index
    %c0_17 = arith.constant 0 : index
    %19 = vector.load %arg1[%c0_15, %c0_16, %c0_17] : memref<1x8x512xf32, #tpu.memory_space<vmem>>, vector<1x8x512xf32>
    %20 = vector.shape_cast %18 : vector<1x8xf32> to vector<1x8x1xf32>
    %21 = vector.broadcast %20 : vector<1x8x1xf32> to vector<1x8x512xf32>
    %22 = arith.mulf %19, %21 : vector<1x8x512xf32>
    %c0_18 = arith.constant 0 : index
    %c0_19 = arith.constant 0 : index
    %c0_20 = arith.constant 0 : index
    %23 = vector.load %arg6[%c0_18, %c0_19, %c0_20] : memref<1x8x512xf32, #tpu.memory_space<vmem>>, vector<1x8x512xf32>
    tpu.vector_store %arg6[%c0_18, %c0_19, %c0_20], %22 {strides = array<i32>} : memref<1x8x512xf32, #tpu.memory_space<vmem>>, vector<1x8x512xf32>,
    return
  }
  func.func @transform_0(%arg0: i32) -> (i32, i32, i32) {
    %c0_i32 = arith.constant 0 : i32
    %c0_i32_0 = arith.constant 0 : i32
    %c0_i32_1 = arith.constant 0 : i32
    return %arg0, %c0_i32, %c0_i32_0 : i32, i32, i32
  }
  func.func @transform_1(%arg0: i32) -> (i32, i32) {
    %c0_i32 = arith.constant 0 : i32
    %c0_i32_0 = arith.constant 0 : i32
    %c0_i32_1 = arith.constant 0 : i32
    return %c0_i32, %c0_i32_0 : i32, i32
  }
  func.func @transform_2(%arg0: i32) -> (i32, i32) {
    %c0_i32 = arith.constant 0 : i32
    %c0_i32_0 = arith.constant 0 : i32
    %c0_i32_1 = arith.constant 0 : i32
    return %c0_i32, %c0_i32_0 : i32, i32
  }
  func.func @transform_3(%arg0: i32) -> (i32, i32) {
    %c0_i32 = arith.constant 0 : i32
    %c0_i32_0 = arith.constant 0 : i32
    %c0_i32_1 = arith.constant 0 : i32
    return %c0_i32, %c0_i32_0 : i32, i32
  }
  func.func @transform_4(%arg0: i32) -> (i32, i32) {
    %c0_i32 = arith.constant 0 : i32
    %c0_i32_0 = arith.constant 0 : i32
    %c0_i32_1 = arith.constant 0 : i32
    return %c0_i32, %c0_i32_0 : i32, i32
  }
  func.func @transform_5(%arg0: i32) -> (i32, i32, i32) {
    %c0_i32 = arith.constant 0 : i32
    %c0_i32_0 = arith.constant 0 : i32
    %c0_i32_1 = arith.constant 0 : i32
    return %arg0, %c0_i32, %c0_i32_0 : i32, i32, i32
  }
}

</mosaic_0001>

<llo_original>
// kernel: tpu_custom_call.1
$region0: #{tpu_custom_call.1}
  #allocation0 [shape = 'u32[]', space=smem, size = 0x4, offset = 0x4, fixed_abs, tag = 'smem constant byte address 0x4 - core index']
  #allocation1 [shape = 'u32[72,128]{1,0:T(1,128)}', space=vmem, size = 0x9000, scoped, tag = 'internal scratch']
  %s0 = inlined_call_operand.hbm [shape: f32[2,8,512], index: 0, kind: input, shape index: {}]
  %s1 = inlined_call_operand.vmem [shape: f32[8,4], index: 1, kind: input, shape index: {}]
  %s2 = inlined_call_operand.vmem [shape: f32[1,4], index: 2, kind: input, shape index: {}]
  %s3 = inlined_call_operand.vmem [shape: f32[4,8], index: 3, kind: input, shape index: {}]
  %s4 = inlined_call_operand.vmem [shape: f32[1,8], index: 4, kind: input, shape index: {}]
  %s5 = inlined_call_operand.hbm [shape: f32[2,8,512], index: 5, kind: output, shape index: {}]
  %s6 = sld [smem:[#allocation0]]
  $region57: #{tpu_custom_call.1} parent=0
    _
  %s8 = ssub.s32 1, %s6
  %s9 = scalar_select 0, %s8, %s6
  $region1: #{tpu_custom_call.1} parent=0
    #allocation2 [shape = 'u8[32768]{0}', space=vmem, size = 0x8000, scoped, tag = 'input window, operand 0']
    #allocation3 [shape = 's32[2]{0}', space=sflag, size = 0x8, scoped, tag = 'scoped memory for tpu_custom_call.1']
    #allocation4 [shape = 's32[2]{0}', space=sflag, size = 0x8, scoped, tag = 'scoped memory for tpu_custom_call.1']
    #allocation5 [shape = 'u8[32768]{0}', space=vmem, size = 0x8000, scoped, tag = 'output window, operand 0']
    %10 = vsyncpa [#allocation3], 0
    %s11 = scalar_lea.sflag [#allocation3], 1
    %12 = vsyncpa %s11, 0
    %13 = vsyncpa [#allocation4], 0
    %s14 = scalar_lea.sflag [#allocation4], 1
    %15 = vsyncpa %s14, 0
    loop: start=0, step=1, limit=4
    $region2: #{tpu_custom_call.1} parent=1 // loop_pre_header
      _
    $region3: #{tpu_custom_call.1} parent=1 // loop_header
      %s17 = sphi 0, %s21
      %p18 = scmp.ge.s32.totalorder %s17, 4
      %s27 = sphi 0, %s29
      %s30 = sphi 0, %s27
      %s31 = sphi 0, %s30
      %s47 = sphi 0, %s31
      %s51 = sphi 0, %s51
      %s53 = sphi 0, %s51
      %s54 = sphi 0, %s53
      %s68 = sphi 0, %s54
      %s72 = sphi 0, %s72
      %s74 = sphi 0, %s72
      %s75 = sphi 0, %s74
      %s89 = sphi 0, %s75
      %s93 = sphi 0, %s93
      %s95 = sphi 0, %s93
      %s96 = sphi 0, %s95
      %s110 = sphi 0, %s96
      %s114 = sphi 0, %s114
      %s116 = sphi 0, %s114
      %s117 = sphi 0, %s116
      %s131 = sphi 0, %s117
      %s137 = sphi 0, %s139
      %s140 = sphi 0, %s137
      %s141 = sphi 0, %s140
      %s157 = sphi 0, %s141
    $region4: #{tpu_custom_call.1} parent=1 // loop_header_branch
      %20 = sbr.rel (%p18) target = $region8
    $region5: #{tpu_custom_call.1} parent=1 // loop_body
      %s22 = ssub.s32 %s17, 1
      %s23 = ssub.s32 %s17, 2
      %s24 = sadd.s32 %s17, 1
      %s25 = ssub.s32 %s17, %s24
      %p26 = scmp.eq.s32.totalorder %s25, 0
      %s28 = sadd.s32 %s27, 1
      %s29 = scalar_select %p26, %s27, %s28
      %p32 = pneg %p26
      %p33 = scmp.eq.s32.totalorder %s17, 1
      %p34 = por %p32, %p33
      %p35 = scmp.ne.s32.totalorder %s27, %s30
      %p36 = scmp.eq.s32.totalorder %s17, 0
      %p37 = por %p35, %p36
      %p38 = scmp.ne.s32.totalorder %s27, %s30
      %p39 = scmp.eq.s32.totalorder %s22, 1
      %p40 = por %p38, %p39
      %p41 = scmp.ne.s32.totalorder %s30, %s31
      %p42 = scmp.eq.s32.totalorder %s22, 0
      %p43 = por %p41, %p42
      %p44 = scmp.ne.s32.totalorder %s30, %s31
      %p45 = scmp.eq.s32.totalorder %s23, 1
      %p46 = por %p44, %p45
      %p48 = scmp.ne.s32.totalorder %s31, %s47
      %p49 = scmp.eq.s32.totalorder %s23, 0
      %p50 = por %p48, %p49
      %s52 = sadd.s32 %s51, 1
      %p55 = scmp.eq.s32.totalorder %s17, 1
      %p56 = scmp.ne.s32.totalorder %s51, %s53
      %p57 = scmp.eq.s32.totalorder %s17, 0
      %p58 = por %p56, %p57
      %p59 = scmp.ne.s32.totalorder %s51, %s53
      %p60 = scmp.eq.s32.totalorder %s22, 1
      %p61 = por %p59, %p60
      %p62 = scmp.ne.s32.totalorder %s53, %s54
      %p63 = scmp.eq.s32.totalorder %s22, 0
      %p64 = por %p62, %p63
      %p65 = scmp.ne.s32.totalorder %s53, %s54
      %p66 = scmp.eq.s32.totalorder %s23, 1
      %p67 = por %p65, %p66
      %p69 = scmp.ne.s32.totalorder %s54, %s68
      %p70 = scmp.eq.s32.totalorder %s23, 0
      %p71 = por %p69, %p70
      %s73 = sadd.s32 %s72, 1
      %p76 = scmp.eq.s32.totalorder %s17, 1
      %p77 = scmp.ne.s32.totalorder %s72, %s74
      %p78 = scmp.eq.s32.totalorder %s17, 0
      %p79 = por %p77, %p78
      %p80 = scmp.ne.s32.totalorder %s72, %s74
      %p81 = scmp.eq.s32.totalorder %s22, 1
      %p82 = por %p80, %p81
      %p83 = scmp.ne.s32.totalorder %s74, %s75
      %p84 = scmp.eq.s32.totalorder %s22, 0
      %p85 = por %p83, %p84
      %p86 = scmp.ne.s32.totalorder %s74, %s75
      %p87 = scmp.eq.s32.totalorder %s23, 1
      %p88 = por %p86, %p87
      %p90 = scmp.ne.s32.totalorder %s75, %s89
      %p91 = scmp.eq.s32.totalorder %s23, 0
      %p92 = por %p90, %p91
      %s94 = sadd.s32 %s93, 1
      %p97 = scmp.eq.s32.totalorder %s17, 1
      %p98 = scmp.ne.s32.totalorder %s93, %s95
      %p99 = scmp.eq.s32.totalorder %s17, 0
      %p100 = por %p98, %p99
      %p101 = scmp.ne.s32.totalorder %s93, %s95
      %p102 = scmp.eq.s32.totalorder %s22, 1
      %p103 = por %p101, %p102
      %p104 = scmp.ne.s32.totalorder %s95, %s96
      %p105 = scmp.eq.s32.totalorder %s22, 0
      %p106 = por %p104, %p105
      %p107 = scmp.ne.s32.totalorder %s95, %s96
      %p108 = scmp.eq.s32.totalorder %s23, 1
      %p109 = por %p107, %p108
      %p111 = scmp.ne.s32.totalorder %s96, %s110
      %p112 = scmp.eq.s32.totalorder %s23, 0
      %p113 = por %p111, %p112
      %s115 = sadd.s32 %s114, 1
      %p118 = scmp.eq.s32.totalorder %s17, 1
      %p119 = scmp.ne.s32.totalorder %s114, %s116
      %p120 = scmp.eq.s32.totalorder %s17, 0
      %p121 = por %p119, %p120
      %p122 = scmp.ne.s32.totalorder %s114, %s116
      %p123 = scmp.eq.s32.totalorder %s22, 1
      %p124 = por %p122, %p123
      %p125 = scmp.ne.s32.totalorder %s116, %s117
      %p126 = scmp.eq.s32.totalorder %s22, 0
      %p127 = por %p125, %p126
      %p128 = scmp.ne.s32.totalorder %s116, %s117
      %p129 = scmp.eq.s32.totalorder %s23, 1
      %p130 = por %p128, %p129
      %p132 = scmp.ne.s32.totalorder %s117, %s131
      %p133 = scmp.eq.s32.totalorder %s23, 0
      %p134 = por %p132, %p133
      %s135 = ssub.s32 %s17, %s24
      %p136 = scmp.eq.s32.totalorder %s135, 0
      %s138 = sadd.s32 %s137, 1
      %s139 = scalar_select %p136, %s137, %s138
      %p142 = pneg %p136
      %p143 = scmp.eq.s32.totalorder %s17, 1
      %p144 = por %p142, %p143
      %p145 = scmp.ne.s32.totalorder %s137, %s140
      %p146 = scmp.eq.s32.totalorder %s17, 0
      %p147 = por %p145, %p146
      %p148 = scmp.ne.s32.totalorder %s137, %s140
      %p149 = scmp.eq.s32.totalorder %s22, 1
      %p150 = por %p148, %p149
      %p151 = scmp.ne.s32.totalorder %s140, %s141
      %p152 = scmp.eq.s32.totalorder %s22, 0
      %p153 = por %p151, %p152
      %p154 = scmp.ne.s32.totalorder %s140, %s141
      %p155 = scmp.eq.s32.totalorder %s23, 1
      %p156 = por %p154, %p155
      %p158 = scmp.ne.s32.totalorder %s141, %s157
      %p159 = scmp.eq.s32.totalorder %s23, 0
      %p160 = por %p158, %p159
      %p161 = scmp.le.s32.totalorder 1, %s17
      %p162 = scmp.lt.s32.totalorder %s17, 3
      %p163 = pnand %p161, %p162
      %p164 = pneg %p163
      // Predicated region
      $region9: #{tpu_custom_call.1} parent=5 // pred_check
        _
      $region10: #{tpu_custom_call.1} parent=5 // pred_check_branch
        %166 = sbr.rel (%p163) target = $region12
      $region11: #{tpu_custom_call.1} parent=5 // pred_region
        %s167 = ssub.s32 %s17, 1
        // Predicated region
        $region13: #{tpu_custom_call.1} parent=11 // pred_check
          %p168 = pneg %p64
        $region14: #{tpu_custom_call.1} parent=11 // pred_check_branch
          %170 = sbr.rel (%p168) target = $region16
        $region15: #{tpu_custom_call.1} parent=11 // pred_region
          _
        $region16: #{tpu_custom_call.1} parent=11 // pred_fallthru
          _
        // Predicated region
        $region17: #{tpu_custom_call.1} parent=11 // pred_check
          %p171 = pneg %p85
        $region18: #{tpu_custom_call.1} parent=11 // pred_check_branch
          %173 = sbr.rel (%p171) target = $region20
        $region19: #{tpu_custom_call.1} parent=11 // pred_region
          _
        $region20: #{tpu_custom_call.1} parent=11 // pred_fallthru
          _
        // Predicated region
        $region21: #{tpu_custom_call.1} parent=11 // pred_check
          %p174 = pneg %p106
        $region22: #{tpu_custom_call.1} parent=11 // pred_check_branch
          %176 = sbr.rel (%p174) target = $region24
        $region23: #{tpu_custom_call.1} parent=11 // pred_region
          _
        $region24: #{tpu_custom_call.1} parent=11 // pred_fallthru
          _
        // Predicated region
        $region25: #{tpu_custom_call.1} parent=11 // pred_check
          %p177 = pneg %p127
        $region26: #{tpu_custom_call.1} parent=11 // pred_check_branch
          %179 = sbr.rel (%p177) target = $region28
        $region27: #{tpu_custom_call.1} parent=11 // pred_region
          _
        $region28: #{tpu_custom_call.1} parent=11 // pred_fallthru
          _
      $region12: #{tpu_custom_call.1} parent=5 // pred_fallthru
        _
      %p180 = scmp.lt.s32.totalorder %s17, 2
      // Predicated region
      $region29: #{tpu_custom_call.1} parent=5 // pred_check
        %p181 = pneg %p180
      $region30: #{tpu_custom_call.1} parent=5 // pred_check_branch
        %183 = sbr.rel (%p181) target = $region32
      $region31: #{tpu_custom_call.1} parent=5 // pred_region
        // Predicated region
        $region33: #{tpu_custom_call.1} parent=31 // pred_check
          %p184 = pneg %p37
        $region34: #{tpu_custom_call.1} parent=31 // pred_check_branch
          %186 = sbr.rel (%p184) target = $region36
        $region35: #{tpu_custom_call.1} parent=31 // pred_region
          %s187 = sand.u32 %s27, 1
          %s188 = scalar_lea.sflag [#allocation3], %s187
          %s189 = sand.u32 %s27, 1
          %s190 = smul.addr %s189, 32
          %s191 = scalar_lea.vmem [#allocation2], %s190
          %193 = vsyncadd %s188, 0
          %s194 = smul.addr %s17, 4
          %s195 = smul.addr %s194, 8
          %s196 = scalar_lea.hbm %s0, %s195
          %s198 = sshll.u32 %s196, 4
          %s199 = int_to_ptr.hbm [resolvable:$true] %s198
          %s200 = sshll.u32 %s191, 4
          %s201 = int_to_ptr.vmem [resolvable:$true] %s200
          %203 = dma.hbm_to_vmem [thread:$0]  %s199, 512, %s201, %s188
        $region36: #{tpu_custom_call.1} parent=31 // pred_fallthru
          _
      $region32: #{tpu_custom_call.1} parent=5 // pred_fallthru
        _
      %p204 = scmp.le.s32.totalorder 1, %s17
      %p205 = scmp.lt.s32.totalorder %s17, 3
      %p206 = pnand %p204, %p205
      %p207 = pneg %p206
      // Predicated region
      $region37: #{tpu_custom_call.1} parent=5 // pred_check
        _
      $region38: #{tpu_custom_call.1} parent=5 // pred_check_branch
        %209 = sbr.rel (%p206) target = $region40
      $region39: #{tpu_custom_call.1} parent=5 // pred_region
        %s210 = ssub.s32 %s17, 1
        %s211 = sand.u32 %s30, 1
        %s212 = scalar_lea.sflag [#allocation3], %s211
        %s213 = sand.u32 %s30, 1
        %s214 = smul.addr %s213, 32
        %s215 = scalar_lea.vmem [#allocation2], %s214
        // Predicated region
        $region41: #{tpu_custom_call.1} parent=39 // pred_check
          %p216 = pneg %p43
        $region42: #{tpu_custom_call.1} parent=39 // pred_check_branch
          %218 = sbr.rel (%p216) target = $region44
        $region43: #{tpu_custom_call.1} parent=39 // pred_region
          %220 = dma.done %s212, 512
        $region44: #{tpu_custom_call.1} parent=39 // pred_fallthru
          _
        %s221 = sand.u32 %s30, 1
        %s222 = scalar_lea.sflag [#allocation3], %s221
        %s223 = sand.u32 %s30, 1
        %s224 = smul.addr %s223, 32
        %s225 = scalar_lea.vmem [#allocation2], %s224
        %p226 = pneg %p43
        %p227 = pneg %p40
        %p228 = pneg %p64
        %p229 = pneg %p61
        %p230 = pneg %p85
        %p231 = pneg %p82
        %p232 = pneg %p106
        %p233 = pneg %p103
        %p234 = pneg %p127
        %p235 = pneg %p124
        %p236 = pneg %p153
        %p237 = pneg %p150
        %s238 = sand.u32 %s140, 1
        %s239 = scalar_lea.sflag [#allocation4], %s238
        %s240 = sand.u32 %s140, 1
        %s241 = smul.addr %s240, 32
        %s242 = scalar_lea.vmem [#allocation5], %s241
        %v243 = vld [vmem:[%s215] sm:$0xff]
        %v244 = vld [vmem:[%s215 + $0x8] sm:$0xff]
        %v245 = vld [vmem:[%s215 + $0x10] sm:$0xff]
        %v246 = vld [vmem:[%s215 + $0x18] sm:$0xff]
        %v247 = vadd.f32 %v243, %v244
        %v248 = vadd.f32 %v247, %v245
        %v249 = vadd.f32 %v248, %v246
        %250 = vadd.xlane.f32.xlu0 %v249
        %v251 = vpop.xlane.xlu0 %250
        %v252 = vmul.f32 %v251, 0.001953125
        %v253 = vld [vmem:[%s1] sm:$0xff]
        %v254 = vld [vmem:[%s2] sm:$0x1]
        %v256 = vlaneseq
        %v257 = vand.u32 %v256, 127
        %v258 = vperm.slane %v252, %v257
        %vm259 = vcmask 64512
        %v260 = vsel %vm259, %v258, 0
        %262 = vmatpush.msra.mxu0 0.0
        %263 = vmatpush.msra.mxu0 0.0
        %264 = vmatpush.msra.mxu0 0.0
        %265 = vmatpush.msra.mxu0 0.0
        %266 = vmatpush.msra.mxu0 0.0
        %267 = vmatpush.msra.mxu0 0.0
        %268 = vmatpush.msra.mxu0 0.0
        %269 = vmatpush.msra.mxu0 0.0
        %270 = vmatpush.msra.mxu0 0.0
        %271 = vmatpush.msra.mxu0 0.0
        %272 = vmatpush.msra.mxu0 0.0
        %273 = vmatpush.msra.mxu0 0.0
        %274 = vmatpush.msra.mxu0 0.0
        %275 = vmatpush.msra.mxu0 0.0
        %276 = vmatpush.msra.mxu0 0.0
        %277 = vmatpush.msra.mxu0 %v253
        %278 = vmatmul.f32.gmra.mxu0 %v260
        %v279 = vpop.f32.mrf.mxu0
        %v280 = vadd.f32 %v254, %v279
        %281 = vdwg.mxu0
        %v282 = vmax.f32 %v280, 0.0
        %v283 = vld [vmem:[%s3] sm:$0xf]
        %v284 = vld [vmem:[%s4] sm:$0x1]
        %vm285 = vcmask 31744
        %v287 = vsel %vm285, %v282, 0
        %vm289 = vcmask 1043456
        %v291 = vsel %vm289, %v283, 0
        %293 = vmatpush.msra.mxu0 0.0
        %294 = vmatpush.msra.mxu0 0.0
        %295 = vmatpush.msra.mxu0 0.0
        %296 = vmatpush.msra.mxu0 0.0
        %297 = vmatpush.msra.mxu0 0.0
        %298 = vmatpush.msra.mxu0 0.0
        %299 = vmatpush.msra.mxu0 0.0
        %300 = vmatpush.msra.mxu0 0.0
        %301 = vmatpush.msra.mxu0 0.0
        %302 = vmatpush.msra.mxu0 0.0
        %303 = vmatpush.msra.mxu0 0.0
        %304 = vmatpush.msra.mxu0 0.0
        %305 = vmatpush.msra.mxu0 0.0
        %306 = vmatpush.msra.mxu0 0.0
        %307 = vmatpush.msra.mxu0 0.0
        %308 = vmatpush.msra.mxu0 %v291
        %309 = vmatmul.f32.gmra.mxu0 %v287
        %v310 = vpop.f32.mrf.mxu0
        %v311 = vadd.f32 %v284, %v310
        %312 = vdwg.mxu0
        %v313 = vxor.u32 %v311, 2147483648
        %v314 = vmul.f32 %v313, 1.442695
        %v315 = vpow.pop %v314
        %v316 = vadd.f32 %v315, 1.0
        %v317 = vrcp.pop %v316
        %v318 = vmul.f32 %v316, %v317
        %v319 = vsub.f32 1.0, %v318
        %v320 = vmul.f32 %v317, %v319
        %v321 = vadd.f32 %v317, %v320
        %vm322 = vweird.f32 %v316
        %vm323 = vweird.f32 %v317
        %vm324 = vmor %vm322, %vm323
        %v325 = vsel %vm324, %v317, %v321
        %v326 = vand.u32 2147483647, %v316
        %vm327 = vcmp.eq.f32.partialorder %v326, 8.507059e+37
        %v328 = vand.u32 %v316, 2147483648
        %v329 = vor.u32 1.1754944e-38, %v328
        %v330 = vsel %vm327, %v329, %v325
        %v331 = vmul.f32 1.0, %v330
        %v332 = vperm.slane %v331, 0
        %v333 = vlaneseq
        %v334 = vshrl.u32 %v333, 7
        %336 = vset.pattern.permute.xlu0 %v334
        %337 = vperm.xlu0 %336, %v332
        %v338 = vpop.permute.xlu0 %337
        %v339 = vmul.f32 %v243, %v338
        %v340 = vmul.f32 %v244, %v338
        %v341 = vmul.f32 %v245, %v338
        %v342 = vmul.f32 %v246, %v338
        %343 = vst [vmem:[%s242] sm:$0xff] %v339
        %344 = vst [vmem:[%s242 + $0x8] sm:$0xff] %v340
        %345 = vst [vmem:[%s242 + $0x10] sm:$0xff] %v341
        %346 = vst [vmem:[%s242 + $0x18] sm:$0xff] %v342
        %s347 = sand.u32 %s140, 1
        %s348 = scalar_lea.sflag [#allocation4], %s347
        %s349 = sand.u32 %s140, 1
        %s350 = smul.addr %s349, 32
        %s351 = scalar_lea.vmem [#allocation5], %s350
        // Predicated region
        $region45: #{tpu_custom_call.1} parent=39 // pred_check
          %p352 = pneg %p150
        $region46: #{tpu_custom_call.1} parent=39 // pred_check_branch
          %354 = sbr.rel (%p352) target = $region48
        $region47: #{tpu_custom_call.1} parent=39 // pred_region
          %356 = vsyncadd %s348, 0
          %s357 = smul.addr %s22, 4
          %s358 = smul.addr %s357, 8
          %s359 = scalar_lea.hbm %s5, %s358
          %s361 = sshll.u32 %s351, 4
          %s362 = int_to_ptr.vmem [resolvable:$true] %s361
          %s363 = sshll.u32 %s359, 4
          %s364 = int_to_ptr.hbm [resolvable:$true] %s363
          %366 = dma.vmem_to_hbm [thread:$0]  %s362, 512, %s364, %s348
        $region48: #{tpu_custom_call.1} parent=39 // pred_fallthru
          _
      $region40: #{tpu_custom_call.1} parent=5 // pred_fallthru
        _
      %p367 = scmp.le.s32.totalorder 2, %s17
      // Predicated region
      $region49: #{tpu_custom_call.1} parent=5 // pred_check
        %p368 = pneg %p367
      $region50: #{tpu_custom_call.1} parent=5 // pred_check_branch
        %370 = sbr.rel (%p368) target = $region52
      $region51: #{tpu_custom_call.1} parent=5 // pred_region
        %s371 = ssub.s32 %s17, 2
        // Predicated region
        $region53: #{tpu_custom_call.1} parent=51 // pred_check
          %p372 = pneg %p156
        $region54: #{tpu_custom_call.1} parent=51 // pred_check_branch
          %374 = sbr.rel (%p372) target = $region56
        $region55: #{tpu_custom_call.1} parent=51 // pred_region
          %s375 = sand.u32 %s141, 1
          %s376 = scalar_lea.sflag [#allocation4], %s375
          %s377 = sand.u32 %s141, 1
          %s378 = smul.addr %s377, 32
          %s379 = scalar_lea.vmem [#allocation5], %s378
          %381 = dma.done %s376, 512
        $region56: #{tpu_custom_call.1} parent=51 // pred_fallthru
          _
      $region52: #{tpu_custom_call.1} parent=5 // pred_fallthru
        _
    $region6: #{tpu_custom_call.1} parent=1 // loop_footer
      %s21 = sadd.s32 1, %s17
    $region7: #{tpu_custom_call.1} parent=1 // loop_footer_branch
      %16 = sbr.rel target = $region3
    $region8: #{tpu_custom_call.1} parent=1 // loop_exit
      _
    %382 = vsyncpa [#allocation3], 1
    %s383 = scalar_lea.sflag [#allocation3], 1
    %384 = vsyncpa %s383, 1
    %385 = vsyncpa [#allocation4], 1
    %s386 = scalar_lea.sflag [#allocation4], 1
    %387 = vsyncpa %s386, 1

</llo_original>
